<compile_context>
chip_gen: v7x
topology: tpu7x:2x2x1
jax: 0.10.0
libtpu: 0.0.40
codegen_flags: <defaults>
</compile_context>

<pallas_src>
import functools
import numpy as np
import jax
import jax.numpy as jnp
from jax import lax
from jax.experimental import pallas as pl
from jax.experimental.pallas import tpu as pltpu

LANE = 128


def _round_up(x, m):
    return ((x + m - 1) // m) * m


# --------------------------------------------------------------------------------------
# Stage 1: top-label confidence / correctness.  probs block (bm, 128, K), native dtype.
# --------------------------------------------------------------------------------------
def _toplabel_kernel(probs_ref, labels_ref, conf_ref, correct_ref):
    p = probs_ref[...]                                     # (bm, 128, K) native dtype
    k = p.shape[2]
    confk = jnp.max(p, axis=2, keepdims=True)              # (bm, 128, 1) for the compare
    cls = lax.broadcasted_iota(jnp.int32, p.shape, 2)
    # first index attaining the max == np.argmax semantics
    pred = jnp.min(jnp.where(p == confk, cls, k), axis=2)  # (bm, 128) int32
    conf_ref[...] = jnp.max(p, axis=2).astype(jnp.float32)           # lane-dense store
    correct_ref[...] = (pred == labels_ref[...]).astype(jnp.float32)  # lane-dense store


# --------------------------------------------------------------------------------------
# Stage 2: streamed equal-mass binning + debiased CE.  Bin boundaries are static ints.
# --------------------------------------------------------------------------------------
def _bin_ce_kernel(conf_ref, corr_ref, z_ref, out_ref, cacc_ref, lacc_ref, *,
                   nb, starts, ends, sizes, bprobs, chunk):
    j = pl.program_id(0)

    @pl.when(j == 0)
    def _init():
        cacc_ref[...] = jnp.zeros_like(cacc_ref)
        lacc_ref[...] = jnp.zeros_like(lacc_ref)

    conf = conf_ref[...]                                   # (bm2, 128) f32 sorted conf
    corr = corr_ref[...]                                   # (bm2, 128) f32 sorted correct
    rows = lax.broadcasted_iota(jnp.int32, conf.shape, 0)
    lanes = lax.broadcasted_iota(jnp.int32, conf.shape, 1)
    idx = j * chunk + rows * LANE + lanes                  # global sorted-sample index

    # static unroll over bins: each bin is a compile-time [start, end) range of the sort;
    # padded tail samples (idx >= n) fall outside every range and are excluded for free.
    for b in range(nb):
        m = (idx >= starts[b]) & (idx < ends[b])
        sl = pl.ds(b, 1)
        cacc_ref[sl, :] = cacc_ref[sl, :] + jnp.sum(
            jnp.where(m, conf, 0.0), axis=0, keepdims=True)
        lacc_ref[sl, :] = lacc_ref[sl, :] + jnp.sum(
            jnp.where(m, corr, 0.0), axis=0, keepdims=True)

    @pl.when(j == pl.num_programs(0) - 1)
    def _finalize():
        r = z_ref.shape[1]
        ce = jnp.zeros((1, 1), jnp.float32)
        tot = jnp.zeros((1, r), jnp.float32)               # per-resample plugin CEs (p=1)
        for b in range(nb):
            sl = pl.ds(b, 1)
            inv = 1.0 / sizes[b]
            mv = jnp.sum(cacc_ref[sl, :], axis=1, keepdims=True) * inv   # mean conf / bin
            lm = jnp.sum(lacc_ref[sl, :], axis=1, keepdims=True) * inv   # mean label / bin
            std = jnp.sqrt(jnp.maximum(lm * (1.0 - lm), 0.0) * inv)
            ce = ce + bprobs[b] * jnp.abs(mv - lm)
            zb = z_ref[sl, :]                              # (1, R) normals for this bin
            tot = tot + bprobs[b] * jnp.abs(lm + zb * std - mv)
        out_ref[0, 0] = 2.0 * ce[0, 0] - jnp.sum(tot) * (1.0 / r)


def debiased_ece(probs, labels, z, num_bins=15):
    """Equivalent of Debaised_ECE().forward(probs, labels) with default args
    (p=1, debias=True, binning_mode='em', mode='top-label')."""
    n, k = probs.shape
    itemsize = jnp.dtype(probs.dtype).itemsize
    k_pad = _round_up(k, LANE)

    # ---- stage-1 tile selection: ~12 MiB of double-buffered probs VMEM per block;
    #      the lane padding of K to 128 is what limits the block for small K.
    n_rt = pl.cdiv(n, LANE)                                # row-tiles of 128 samples
    per_rt = LANE * k_pad * itemsize                       # probs VMEM bytes per row-tile
    bm = max(1, int((12 << 20) // (2 * per_rt)))
    if n_rt >= 2:
        bm = min(bm, pl.cdiv(n_rt, 2))                     # keep grid >= 2 for megacore
    bm = min(bm, n_rt)
    g = pl.cdiv(n_rt, bm)
    n_pad = g * bm * LANE

    probs_p = probs
    labels_p = labels.astype(jnp.int32)
    if n_pad != n:
        # contiguous pad (far cheaper than an HBM transpose); padded conf = +inf sorts last
        probs_p = jnp.pad(probs_p, ((0, n_pad - n), (0, 0)), constant_values=jnp.inf)
        labels_p = jnp.pad(labels_p, ((0, n_pad - n),), constant_values=-1)

    probs3 = probs_p.reshape(n_pad // LANE, LANE, k)       # free row-major reshapes
    labels2 = labels_p.reshape(n_pad // LANE, LANE)

    conf2d, corr2d = pl.pallas_call(
        _toplabel_kernel,
        out_shape=(jax.ShapeDtypeStruct((n_pad // LANE, LANE), jnp.float32),
                   jax.ShapeDtypeStruct((n_pad // LANE, LANE), jnp.float32)),
        grid=(g,),
        in_specs=[pl.BlockSpec((bm, LANE, k), lambda i: (i, 0, 0)),
                  pl.BlockSpec((bm, LANE), lambda i: (i, 0))],
        out_specs=(pl.BlockSpec((bm, LANE), lambda i: (i, 0)),
                   pl.BlockSpec((bm, LANE), lambda i: (i, 0))),
        compiler_params=pltpu.CompilerParams(
            dimension_semantics=("parallel",),
            vmem_limit_bytes=32 * 1024 * 1024),
        cost_estimate=pl.CostEstimate(
            flops=2 * n_pad * k, transcendentals=0,
            bytes_accessed=n_pad * k * itemsize + 12 * n_pad),
    )(probs3, labels2)

    # TODO(synk): sorting has no Pallas TPU primitive; one multi-operand stable XLA sort
    # co-sorts (conf, correct) -- no argsort permutation or gather passes.
    sorted_conf, sorted_corr = lax.sort(
        (conf2d.reshape(n_pad), corr2d.reshape(n_pad)), num_keys=1, is_stable=True)

    # ---- static equal-mass bin structure (np.array_split semantics over first n samples)
    nb = min(num_bins, n)
    splits = np.array_split(np.arange(n), nb)
    sizes = [float(len(s)) for s in splits]
    starts = [int(s[0]) for s in splits]
    ends = [int(s[-1]) + 1 for s in splits]
    bprobs = [sz / float(n) for sz in sizes]

    # ---- stage-2 streaming chunks over the sorted arrays (bounded VMEM)
    total_rt = n_pad // LANE
    bm2 = bm
    while total_rt % (bm2 * 2) == 0 and bm2 * 2 <= 1024:
        bm2 *= 2
    g2 = total_rt // bm2
    chunk = bm2 * LANE

    nbp = _round_up(nb, 8)
    r = int(z.shape[0])
    z_k = jnp.asarray(z, jnp.float32)[:, :nb].T            # (nb, R): bins x resamples

    kern2 = functools.partial(
        _bin_ce_kernel, nb=nb, starts=tuple(starts), ends=tuple(ends),
        sizes=tuple(sizes), bprobs=tuple(bprobs), chunk=chunk)

    out = pl.pallas_call(
        kern2,
        out_shape=jax.ShapeDtypeStruct((1, 1), jnp.float32),
        grid=(g2,),
        in_specs=[pl.BlockSpec((bm2, LANE), lambda j: (j, 0)),
                  pl.BlockSpec((bm2, LANE), lambda j: (j, 0)),
                  pl.BlockSpec((nb, r), lambda j: (0, 0))],
        out_specs=pl.BlockSpec((1, 1), lambda j: (0, 0),
                               memory_space=pltpu.MemorySpace.SMEM),
        scratch_shapes=[pltpu.VMEM((nbp, LANE), jnp.float32),
                        pltpu.VMEM((nbp, LANE), jnp.float32)],
        compiler_params=pltpu.CompilerParams(
            dimension_semantics=("arbitrary",),
            vmem_limit_bytes=32 * 1024 * 1024),
        cost_estimate=pl.CostEstimate(
            flops=4 * n_pad * nb + 6 * nb * r, transcendentals=nb,
            bytes_accessed=8 * n_pad + 4 * nb * r),
    )(sorted_conf.reshape(total_rt, LANE),
      sorted_corr.reshape(total_rt, LANE),
      z_k)
    return out[0, 0]


def reference_debiased_ece(probs, labels, z, num_bins=15):
    """Pure-numpy replica of the PyTorch module's forward (same normals z)."""
    probs = np.asarray(probs, dtype=np.float32)
    labels = np.asarray(labels)
    z = np.asarray(z, dtype=np.float64)
    conf = np.max(probs, 1)
    pred = np.argmax(probs, 1)
    correct = (pred == labels).astype(np.float64)
    order = np.argsort(conf, kind="stable")
    sc = conf[order].astype(np.float64)
    sl = correct[order]
    nb = min(num_bins, len(sc))
    splits = np.array_split(np.arange(len(sc)), nb)
    sizes = np.array([len(s) for s in splits], dtype=np.float64)
    assert sizes.min() > 1
    label_means = np.array([sl[s].mean() for s in splits])
    model_vals = np.array([sc[s].mean() for s in splits])
    label_std = np.sqrt(label_means * (1.0 - label_means) / sizes)
    bprob = sizes / len(sc)
    ce = np.dot(bprob, np.abs(model_vals - label_means))            # p = 1
    samples = label_means[None, :] + z[:, :nb] * label_std[None, :]
    diffs = np.abs(samples - model_vals[None, :])
    cur_ces = diffs @ bprob
    return 2.0 * ce - cur_ces.mean()


if __name__ == "__main__":
    N, K, NB, R = 64, 4, 15, 1000
    key = jax.random.PRNGKey(0)
    k1, k2, k3 = jax.random.split(key, 3)
    logits = jax.random.normal(k1, (N, K), jnp.float32)
    probs = jax.nn.softmax(logits, axis=-1)
    labels = jax.random.randint(k2, (N,), 0, K, jnp.int32)
    z = jax.random.normal(k3, (R, NB), jnp.float32)   # deterministic stand-in for np.random.normal

    result = debiased_ece(probs, labels, z, num_bins=NB)
    result = jax.block_until_ready(result)

    ref = reference_debiased_ece(np.asarray(probs), np.asarray(labels), np.asarray(z), num_bins=NB)
    assert np.isfinite(float(result))
    np.testing.assert_allclose(float(result), float(ref), rtol=1e-3, atol=1e-4)
    print("KERNEL_OK")
</pallas_src>

<mosaic_0001>
module attributes {stable_mosaic.version = 11 : i64} {
  func.func @_toplabel_kernel(%arg0: i32, %arg1: memref<1x128x4xf32, #tpu.memory_space<vmem>>, %arg2: memref<1x128xi32, #tpu.memory_space<vmem>>, %arg3: memref<1x128xf32, #tpu.memory_space<vmem>>, %arg4: memref<1x128xf32, #tpu.memory_space<vmem>>) attributes {dimension_semantics = [#tpu.dimension_semantics<parallel>], iteration_bounds = array<i64: 1>, scalar_prefetch = 0 : i64, scratch_operands = 0 : i64, tpu.core_type = #tpu.core_type<tc>, window_params = [{transform_indices = @transform_0, window_bounds = array<i64: 1, 128, 4>}, {transform_indices = @transform_1, window_bounds = array<i64: 1, 128>}, {transform_indices = @transform_2, window_bounds = array<i64: 1, 128>}, {transform_indices = @transform_3, window_bounds = array<i64: 1, 128>}]} {
    %c0 = arith.constant 0 : index
    %c0_0 = arith.constant 0 : index
    %c0_1 = arith.constant 0 : index
    %0 = vector.load %arg1[%c0, %c0_0, %c0_1] : memref<1x128x4xf32, #tpu.memory_space<vmem>>, vector<1x128x4xf32>
    %cst = arith.constant dense<0xFF800000> : vector<1x128xf32>
    %1 = vector.multi_reduction <maximumf>, %0, %cst [2] : vector<1x128x4xf32> to vector<1x128xf32>
    %2 = vector.shape_cast %1 : vector<1x128xf32> to vector<1x128x1xf32>
    %3 = tpu.iota {dimensions = array<i32: 2>} : vector<1x128x4xi32>
    %4 = vector.broadcast %2 : vector<1x128x1xf32> to vector<1x128x4xf32>
    %5 = arith.cmpf oeq, %0, %4 : vector<1x128x4xf32>
    %c4_i32 = arith.constant 4 : i32
    %6 = vector.broadcast %c4_i32 : i32 to vector<1x128x4xi32>
    %7 = arith.select %5, %3, %6 : vector<1x128x4xi1>, vector<1x128x4xi32>
    %cst_2 = arith.constant dense<2147483647> : vector<1x128xi32>
    %8 = vector.multi_reduction <minsi>, %7, %cst_2 [2] : vector<1x128x4xi32> to vector<1x128xi32>
    %cst_3 = arith.constant dense<0xFF800000> : vector<1x128xf32>
    %9 = vector.multi_reduction <maximumf>, %0, %cst_3 [2] : vector<1x128x4xf32> to vector<1x128xf32>
    %c0_4 = arith.constant 0 : index
    %c0_5 = arith.constant 0 : index
    %10 = vector.load %arg3[%c0_4, %c0_5] : memref<1x128xf32, #tpu.memory_space<vmem>>, vector<1x128xf32>
    tpu.vector_store %arg3[%c0_4, %c0_5], %9 {strides = array<i32>} : memref<1x128xf32, #tpu.memory_space<vmem>>, vector<1x128xf32>,
    %c0_6 = arith.constant 0 : index
    %c0_7 = arith.constant 0 : index
    %11 = vector.load %arg2[%c0_6, %c0_7] : memref<1x128xi32, #tpu.memory_space<vmem>>, vector<1x128xi32>
    %12 = arith.cmpi eq, %8, %11 : vector<1x128xi32>
    %13 = arith.extui %12 : vector<1x128xi1> to vector<1x128xi32>
    %14 = arith.sitofp %13 : vector<1x128xi32> to vector<1x128xf32>
    %c0_8 = arith.constant 0 : index
    %c0_9 = arith.constant 0 : index
    %15 = vector.load %arg4[%c0_8, %c0_9] : memref<1x128xf32, #tpu.memory_space<vmem>>, vector<1x128xf32>
    tpu.vector_store %arg4[%c0_8, %c0_9], %14 {strides = array<i32>} : memref<1x128xf32, #tpu.memory_space<vmem>>, vector<1x128xf32>,
    return
  }
  func.func @transform_0(%arg0: i32) -> (i32, i32, i32) {
    %c0_i32 = arith.constant 0 : i32
    %c0_i32_0 = arith.constant 0 : i32
    %c0_i32_1 = arith.constant 0 : i32
    return %arg0, %c0_i32, %c0_i32_0 : i32, i32, i32
  }
  func.func @transform_1(%arg0: i32) -> (i32, i32) {
    %c0_i32 = arith.constant 0 : i32
    %c0_i32_0 = arith.constant 0 : i32
    return %arg0, %c0_i32 : i32, i32
  }
  func.func @transform_2(%arg0: i32) -> (i32, i32) {
    %c0_i32 = arith.constant 0 : i32
    %c0_i32_0 = arith.constant 0 : i32
    return %arg0, %c0_i32 : i32, i32
  }
  func.func @transform_3(%arg0: i32) -> (i32, i32) {
    %c0_i32 = arith.constant 0 : i32
    %c0_i32_0 = arith.constant 0 : i32
    return %arg0, %c0_i32 : i32, i32
  }
}

</mosaic_0001>

<llo_original>
// kernel: tpu_custom_call.1
$region0: #{tpu_custom_call.1}
  #allocation0 [shape = 'u32[]', space=smem, size = 0x4, offset = 0x4, fixed_abs, tag = 'smem constant byte address 0x4 - core index']
  #allocation1 [shape = 'u32[144,128]{1,0:T(1,128)}', space=vmem, size = 0x12000, scoped, tag = 'internal scratch']
  %s0 = inlined_call_operand.vmem [shape: f32[1,128,4], index: 0, kind: input, shape index: {}]
  %s1 = inlined_call_operand.vmem [shape: s32[1,128], index: 1, kind: input, shape index: {}]
  %s2 = inlined_call_operand.hbm [shape: f32[1,128], index: 2, kind: output, shape index: {0}]
  %s3 = inlined_call_operand.hbm [shape: f32[1,128], index: 3, kind: output, shape index: {1}]
  %4 = xla_tuple %s2, %s3
  %s5 = sld [smem:[#allocation0]]
  $region26: #{tpu_custom_call.1} parent=0
    _
  %s7 = ssub.s32 1, %s5
  %s8 = scalar_select 0, %s7, %s5
  $region1: #{tpu_custom_call.1} parent=0
    #allocation2 [shape = 'u8[512]{0}', space=vmem, size = 0x400, scoped, tag = 'output window, operand 0, single buffered']
    #allocation3 [shape = 's32[1]{0}', space=sflag, size = 0x4, scoped, tag = 'scoped memory for tpu_custom_call.1']
    #allocation4 [shape = 'u8[512]{0}', space=vmem, size = 0x400, scoped, tag = 'output window, operand 1, single buffered']
    #allocation5 [shape = 's32[1]{0}', space=sflag, size = 0x4, scoped, tag = 'scoped memory for tpu_custom_call.1']
    %9 = vsyncpa [#allocation3], 0
    %10 = vsyncpa [#allocation5], 0
    // Predicated region
    $region2: #{tpu_custom_call.1} parent=1 // pred_check
      _
    $region3: #{tpu_custom_call.1} parent=1 // pred_check_branch
      %12 = sbr.rel (0) target = $region5
    $region4: #{tpu_custom_call.1} parent=1 // pred_region
      _
    $region5: #{tpu_custom_call.1} parent=1 // pred_fallthru
      _
    // Predicated region
    $region6: #{tpu_custom_call.1} parent=1 // pred_check
      _
    $region7: #{tpu_custom_call.1} parent=1 // pred_check_branch
      %14 = sbr.rel (0) target = $region9
    $region8: #{tpu_custom_call.1} parent=1 // pred_region
      _
    $region9: #{tpu_custom_call.1} parent=1 // pred_fallthru
      _
    %v15 = vld [vmem:[%s0] sm:$0xff]
    %v16 = vld [vmem:[%s0 + $0x8] sm:$0xff]
    %v17 = vld [vmem:[%s0 + $0x10] sm:$0xff]
    %v18 = vld [vmem:[%s0 + $0x18] sm:$0xff]
    %v19 = vld [vmem:[%s0 + $0x20] sm:$0xff]
    %v20 = vld [vmem:[%s0 + $0x28] sm:$0xff]
    %v21 = vld [vmem:[%s0 + $0x30] sm:$0xff]
    %v22 = vld [vmem:[%s0 + $0x38] sm:$0xff]
    %v23 = vld [vmem:[%s0 + $0x40] sm:$0xff]
    %v24 = vld [vmem:[%s0 + $0x48] sm:$0xff]
    %v25 = vld [vmem:[%s0 + $0x50] sm:$0xff]
    %v26 = vld [vmem:[%s0 + $0x58] sm:$0xff]
    %v27 = vld [vmem:[%s0 + $0x60] sm:$0xff]
    %v28 = vld [vmem:[%s0 + $0x68] sm:$0xff]
    %v29 = vld [vmem:[%s0 + $0x70] sm:$0xff]
    %v30 = vld [vmem:[%s0 + $0x78] sm:$0xff]
    %vm31 = vcmask 31744
    %v32 = vsel %vm31, %v15, -inf
    %33 = vmax.xlane.f32.xlu0 %v32
    %v34 = vpop.xlane.xlu0 %33
    %v35 = vsel %vm31, %v16, -inf
    %36 = vmax.xlane.f32.xlu0 %v35
    %v37 = vpop.xlane.xlu0 %36
    %v38 = vsel %vm31, %v17, -inf
    %39 = vmax.xlane.f32.xlu0 %v38
    %v40 = vpop.xlane.xlu0 %39
    %v41 = vsel %vm31, %v18, -inf
    %42 = vmax.xlane.f32.xlu0 %v41
    %v43 = vpop.xlane.xlu0 %42
    %v44 = vsel %vm31, %v19, -inf
    %45 = vmax.xlane.f32.xlu0 %v44
    %v46 = vpop.xlane.xlu0 %45
    %v47 = vsel %vm31, %v20, -inf
    %48 = vmax.xlane.f32.xlu0 %v47
    %v49 = vpop.xlane.xlu0 %48
    %v50 = vsel %vm31, %v21, -inf
    %51 = vmax.xlane.f32.xlu0 %v50
    %v52 = vpop.xlane.xlu0 %51
    %v53 = vsel %vm31, %v22, -inf
    %54 = vmax.xlane.f32.xlu0 %v53
    %v55 = vpop.xlane.xlu0 %54
    %v56 = vsel %vm31, %v23, -inf
    %57 = vmax.xlane.f32.xlu0 %v56
    %v58 = vpop.xlane.xlu0 %57
    %v59 = vsel %vm31, %v24, -inf
    %60 = vmax.xlane.f32.xlu0 %v59
    %v61 = vpop.xlane.xlu0 %60
    %v62 = vsel %vm31, %v25, -inf
    %63 = vmax.xlane.f32.xlu0 %v62
    %v64 = vpop.xlane.xlu0 %63
    %v65 = vsel %vm31, %v26, -inf
    %66 = vmax.xlane.f32.xlu0 %v65
    %v67 = vpop.xlane.xlu0 %66
    %v68 = vsel %vm31, %v27, -inf
    %69 = vmax.xlane.f32.xlu0 %v68
    %v70 = vpop.xlane.xlu0 %69
    %v71 = vsel %vm31, %v28, -inf
    %72 = vmax.xlane.f32.xlu0 %v71
    %v73 = vpop.xlane.xlu0 %72
    %v74 = vsel %vm31, %v29, -inf
    %75 = vmax.xlane.f32.xlu0 %v74
    %v76 = vpop.xlane.xlu0 %75
    %v77 = vsel %vm31, %v30, -inf
    %78 = vmax.xlane.f32.xlu0 %v77
    %v79 = vpop.xlane.xlu0 %78
    %v80 = vlaneseq
    %v81 = vand.u32 %v80, 127
    %vm82 = vcmp.eq.f32.partialorder %v15, %v34
    %vm83 = vcmp.eq.f32.partialorder %v16, %v37
    %vm84 = vcmp.eq.f32.partialorder %v17, %v40
    %vm85 = vcmp.eq.f32.partialorder %v18, %v43
    %vm86 = vcmp.eq.f32.partialorder %v19, %v46
    %vm87 = vcmp.eq.f32.partialorder %v20, %v49
    %vm88 = vcmp.eq.f32.partialorder %v21, %v52
    %vm89 = vcmp.eq.f32.partialorder %v22, %v55
    %vm90 = vcmp.eq.f32.partialorder %v23, %v58
    %vm91 = vcmp.eq.f32.partialorder %v24, %v61
    %vm92 = vcmp.eq.f32.partialorder %v25, %v64
    %vm93 = vcmp.eq.f32.partialorder %v26, %v67
    %vm94 = vcmp.eq.f32.partialorder %v27, %v70
    %vm95 = vcmp.eq.f32.partialorder %v28, %v73
    %vm96 = vcmp.eq.f32.partialorder %v29, %v76
    %vm97 = vcmp.eq.f32.partialorder %v30, %v79
    %v98 = vsel %vm82, %v81, 4
    %v99 = vsel %vm83, %v81, 4
    %v100 = vsel %vm84, %v81, 4
    %v101 = vsel %vm85, %v81, 4
    %v102 = vsel %vm86, %v81, 4
    %v103 = vsel %vm87, %v81, 4
    %v104 = vsel %vm88, %v81, 4
    %v105 = vsel %vm89, %v81, 4
    %v106 = vsel %vm90, %v81, 4
    %v107 = vsel %vm91, %v81, 4
    %v108 = vsel %vm92, %v81, 4
    %v109 = vsel %vm93, %v81, 4
    %v110 = vsel %vm94, %v81, 4
    %v111 = vsel %vm95, %v81, 4
    %v112 = vsel %vm96, %v81, 4
    %v113 = vsel %vm97, %v81, 4
    %v114 = vsel %vm31, %v98, 2147483647
    %v115 = vand.u32 %v114, 65535
    %v116 = vshra.s32 %v114, 16
    %v117 = vcvt.s32.f32 %v115
    %v118 = vcvt.s32.f32 %v116
    %119 = vmin.xlane.f32.xlu0 %v118
    %v120 = vpop.xlane.xlu0 %119
    %vm121 = vcmp.eq.f32.partialorder %v118, %v120
    %v122 = vsel %vm121, %v117, inf
    %123 = vmin.xlane.f32.xlu0 %v122
    %v124 = vpop.xlane.xlu0 %123
    %v125 = vcvt.f32.s32 %v124
    %v126 = vcvt.f32.s32 %v120
    %v127 = vshll.u32 %v126, 16
    %v128 = vadd.s32 %v127, %v125
    %v129 = vsel %vm31, %v99, 2147483647
    %v130 = vand.u32 %v129, 65535
    %v131 = vshra.s32 %v129, 16
    %v132 = vcvt.s32.f32 %v130
    %v133 = vcvt.s32.f32 %v131
    %134 = vmin.xlane.f32.xlu0 %v133
    %v135 = vpop.xlane.xlu0 %134
    %vm136 = vcmp.eq.f32.partialorder %v133, %v135
    %v137 = vsel %vm136, %v132, inf
    %138 = vmin.xlane.f32.xlu0 %v137
    %v139 = vpop.xlane.xlu0 %138
    %v140 = vcvt.f32.s32 %v139
    %v141 = vcvt.f32.s32 %v135
    %v142 = vshll.u32 %v141, 16
    %v143 = vadd.s32 %v142, %v140
    %v144 = vsel %vm31, %v100, 2147483647
    %v145 = vand.u32 %v144, 65535
    %v146 = vshra.s32 %v144, 16
    %v147 = vcvt.s32.f32 %v145
    %v148 = vcvt.s32.f32 %v146
    %149 = vmin.xlane.f32.xlu0 %v148
    %v150 = vpop.xlane.xlu0 %149
    %vm151 = vcmp.eq.f32.partialorder %v148, %v150
    %v152 = vsel %vm151, %v147, inf
    %153 = vmin.xlane.f32.xlu0 %v152
    %v154 = vpop.xlane.xlu0 %153
    %v155 = vcvt.f32.s32 %v154
    %v156 = vcvt.f32.s32 %v150
    %v157 = vshll.u32 %v156, 16
    %v158 = vadd.s32 %v157, %v155
    %v159 = vsel %vm31, %v101, 2147483647
    %v160 = vand.u32 %v159, 65535
    %v161 = vshra.s32 %v159, 16
    %v162 = vcvt.s32.f32 %v160
    %v163 = vcvt.s32.f32 %v161
    %164 = vmin.xlane.f32.xlu0 %v163
    %v165 = vpop.xlane.xlu0 %164
    %vm166 = vcmp.eq.f32.partialorder %v163, %v165
    %v167 = vsel %vm166, %v162, inf
    %168 = vmin.xlane.f32.xlu0 %v167
    %v169 = vpop.xlane.xlu0 %168
    %v170 = vcvt.f32.s32 %v169
    %v171 = vcvt.f32.s32 %v165
    %v172 = vshll.u32 %v171, 16
    %v173 = vadd.s32 %v172, %v170
    %v174 = vsel %vm31, %v102, 2147483647
    %v175 = vand.u32 %v174, 65535
    %v176 = vshra.s32 %v174, 16
    %v177 = vcvt.s32.f32 %v175
    %v178 = vcvt.s32.f32 %v176
    %179 = vmin.xlane.f32.xlu0 %v178
    %v180 = vpop.xlane.xlu0 %179
    %vm181 = vcmp.eq.f32.partialorder %v178, %v180
    %v182 = vsel %vm181, %v177, inf
    %183 = vmin.xlane.f32.xlu0 %v182
    %v184 = vpop.xlane.xlu0 %183
    %v185 = vcvt.f32.s32 %v184
    %v186 = vcvt.f32.s32 %v180
    %v187 = vshll.u32 %v186, 16
    %v188 = vadd.s32 %v187, %v185
    %v189 = vsel %vm31, %v103, 2147483647
    %v190 = vand.u32 %v189, 65535
    %v191 = vshra.s32 %v189, 16
    %v192 = vcvt.s32.f32 %v190
    %v193 = vcvt.s32.f32 %v191
    %194 = vmin.xlane.f32.xlu0 %v193
    %v195 = vpop.xlane.xlu0 %194
    %vm196 = vcmp.eq.f32.partialorder %v193, %v195
    %v197 = vsel %vm196, %v192, inf
    %198 = vmin.xlane.f32.xlu0 %v197
    %v199 = vpop.xlane.xlu0 %198
    %v200 = vcvt.f32.s32 %v199
    %v201 = vcvt.f32.s32 %v195
    %v202 = vshll.u32 %v201, 16
    %v203 = vadd.s32 %v202, %v200
    %v204 = vsel %vm31, %v104, 2147483647
    %v205 = vand.u32 %v204, 65535
    %v206 = vshra.s32 %v204, 16
    %v207 = vcvt.s32.f32 %v205
    %v208 = vcvt.s32.f32 %v206
    %209 = vmin.xlane.f32.xlu0 %v208
    %v210 = vpop.xlane.xlu0 %209
    %vm211 = vcmp.eq.f32.partialorder %v208, %v210
    %v212 = vsel %vm211, %v207, inf
    %213 = vmin.xlane.f32.xlu0 %v212
    %v214 = vpop.xlane.xlu0 %213
    %v215 = vcvt.f32.s32 %v214
    %v216 = vcvt.f32.s32 %v210
    %v217 = vshll.u32 %v216, 16
    %v218 = vadd.s32 %v217, %v215
    %v219 = vsel %vm31, %v105, 2147483647
    %v220 = vand.u32 %v219, 65535
    %v221 = vshra.s32 %v219, 16
    %v222 = vcvt.s32.f32 %v220
    %v223 = vcvt.s32.f32 %v221
    %224 = vmin.xlane.f32.xlu0 %v223
    %v225 = vpop.xlane.xlu0 %224
    %vm226 = vcmp.eq.f32.partialorder %v223, %v225
    %v227 = vsel %vm226, %v222, inf
    %228 = vmin.xlane.f32.xlu0 %v227
    %v229 = vpop.xlane.xlu0 %228
    %v230 = vcvt.f32.s32 %v229
    %v231 = vcvt.f32.s32 %v225
    %v232 = vshll.u32 %v231, 16
    %v233 = vadd.s32 %v232, %v230
    %v234 = vsel %vm31, %v106, 2147483647
    %v235 = vand.u32 %v234, 65535
    %v236 = vshra.s32 %v234, 16
    %v237 = vcvt.s32.f32 %v235
    %v238 = vcvt.s32.f32 %v236
    %239 = vmin.xlane.f32.xlu0 %v238
    %v240 = vpop.xlane.xlu0 %239
    %vm241 = vcmp.eq.f32.partialorder %v238, %v240
    %v242 = vsel %vm241, %v237, inf
    %243 = vmin.xlane.f32.xlu0 %v242
    %v244 = vpop.xlane.xlu0 %243
    %v245 = vcvt.f32.s32 %v244
    %v246 = vcvt.f32.s32 %v240
    %v247 = vshll.u32 %v246, 16
    %v248 = vadd.s32 %v247, %v245
    %v249 = vsel %vm31, %v107, 2147483647
    %v250 = vand.u32 %v249, 65535
    %v251 = vshra.s32 %v249, 16
    %v252 = vcvt.s32.f32 %v250
    %v253 = vcvt.s32.f32 %v251
    %254 = vmin.xlane.f32.xlu0 %v253
    %v255 = vpop.xlane.xlu0 %254
    %vm256 = vcmp.eq.f32.partialorder %v253, %v255
    %v257 = vsel %vm256, %v252, inf
    %258 = vmin.xlane.f32.xlu0 %v257
    %v259 = vpop.xlane.xlu0 %258
    %v260 = vcvt.f32.s32 %v259
    %v261 = vcvt.f32.s32 %v255
    %v262 = vshll.u32 %v261, 16
    %v263 = vadd.s32 %v262, %v260
    %v264 = vsel %vm31, %v108, 2147483647
    %v265 = vand.u32 %v264, 65535
    %v266 = vshra.s32 %v264, 16
    %v267 = vcvt.s32.f32 %v265
    %v268 = vcvt.s32.f32 %v266
    %269 = vmin.xlane.f32.xlu0 %v268
    %v270 = vpop.xlane.xlu0 %269
    %vm271 = vcmp.eq.f32.partialorder %v268, %v270
    %v272 = vsel %vm271, %v267, inf
    %273 = vmin.xlane.f32.xlu0 %v272
    %v274 = vpop.xlane.xlu0 %273
    %v275 = vcvt.f32.s32 %v274
    %v276 = vcvt.f32.s32 %v270
    %v277 = vshll.u32 %v276, 16
    %v278 = vadd.s32 %v277, %v275
    %v279 = vsel %vm31, %v109, 2147483647
    %v280 = vand.u32 %v279, 65535
    %v281 = vshra.s32 %v279, 16
    %v282 = vcvt.s32.f32 %v280
    %v283 = vcvt.s32.f32 %v281
    %284 = vmin.xlane.f32.xlu0 %v283
    %v285 = vpop.xlane.xlu0 %284
    %vm286 = vcmp.eq.f32.partialorder %v283, %v285
    %v287 = vsel %vm286, %v282, inf
    %288 = vmin.xlane.f32.xlu0 %v287
    %v289 = vpop.xlane.xlu0 %288
    %v290 = vcvt.f32.s32 %v289
    %v291 = vcvt.f32.s32 %v285
    %v292 = vshll.u32 %v291, 16
    %v293 = vadd.s32 %v292, %v290
    %v294 = vsel %vm31, %v110, 2147483647
    %v295 = vand.u32 %v294, 65535
    %v296 = vshra.s32 %v294, 16
    %v297 = vcvt.s32.f32 %v295
    %v298 = vcvt.s32.f32 %v296
    %299 = vmin.xlane.f32.xlu0 %v298
    %v300 = vpop.xlane.xlu0 %299
    %vm301 = vcmp.eq.f32.partialorder %v298, %v300
    %v302 = vsel %vm301, %v297, inf
    %303 = vmin.xlane.f32.xlu0 %v302
    %v304 = vpop.xlane.xlu0 %303
    %v305 = vcvt.f32.s32 %v304
    %v306 = vcvt.f32.s32 %v300
    %v307 = vshll.u32 %v306, 16
    %v308 = vadd.s32 %v307, %v305
    %v309 = vsel %vm31, %v111, 2147483647
    %v310 = vand.u32 %v309, 65535
    %v311 = vshra.s32 %v309, 16
    %v312 = vcvt.s32.f32 %v310
    %v313 = vcvt.s32.f32 %v311
    %314 = vmin.xlane.f32.xlu0 %v313
    %v315 = vpop.xlane.xlu0 %314
    %vm316 = vcmp.eq.f32.partialorder %v313, %v315
    %v317 = vsel %vm316, %v312, inf
    %318 = vmin.xlane.f32.xlu0 %v317
    %v319 = vpop.xlane.xlu0 %318
    %v320 = vcvt.f32.s32 %v319
    %v321 = vcvt.f32.s32 %v315
    %v322 = vshll.u32 %v321, 16
    %v323 = vadd.s32 %v322, %v320
    %v324 = vsel %vm31, %v112, 2147483647
    %v325 = vand.u32 %v324, 65535
    %v326 = vshra.s32 %v324, 16
    %v327 = vcvt.s32.f32 %v325
    %v328 = vcvt.s32.f32 %v326
    %329 = vmin.xlane.f32.xlu0 %v328
    %v330 = vpop.xlane.xlu0 %329
    %vm331 = vcmp.eq.f32.partialorder %v328, %v330
    %v332 = vsel %vm331, %v327, inf
    %333 = vmin.xlane.f32.xlu0 %v332
    %v334 = vpop.xlane.xlu0 %333
    %v335 = vcvt.f32.s32 %v334
    %v336 = vcvt.f32.s32 %v330
    %v337 = vshll.u32 %v336, 16
    %v338 = vadd.s32 %v337, %v335
    %v339 = vsel %vm31, %v113, 2147483647
    %v340 = vand.u32 %v339, 65535
    %v341 = vshra.s32 %v339, 16
    %v342 = vcvt.s32.f32 %v340
    %v343 = vcvt.s32.f32 %v341
    %344 = vmin.xlane.f32.xlu0 %v343
    %v345 = vpop.xlane.xlu0 %344
    %vm346 = vcmp.eq.f32.partialorder %v343, %v345
    %v347 = vsel %vm346, %v342, inf
    %348 = vmin.xlane.f32.xlu0 %v347
    %v349 = vpop.xlane.xlu0 %348
    %v350 = vcvt.f32.s32 %v349
    %v351 = vcvt.f32.s32 %v345
    %v352 = vshll.u32 %v351, 16
    %v353 = vadd.s32 %v352, %v350
    %v370 = vlaneseq
    %v371 = vshrl.u32 %v370, 7
    %v372 = vsub.s32 %v81, %v371
    %v373 = vrot.slane %v34, %v372
    %v374 = vadd.s32 %v81, 4294967288
    %v375 = vlaneseq
    %v376 = vshrl.u32 %v375, 7
    %v377 = vsub.s32 %v374, %v376
    %v378 = vrot.slane %v37, %v377
    %vm379 = vcmask 130112
    %v380 = vsel %vm379, %v378, %v373
    %v381 = vadd.s32 %v81, 4294967280
    %v382 = vlaneseq
    %v383 = vshrl.u32 %v382, 7
    %v384 = vsub.s32 %v381, %v383
    %v385 = vrot.slane %v40, %v384
    %vm386 = vcmask 195712
    %v387 = vsel %vm386, %v385, %v380
    %v388 = vadd.s32 %v81, 4294967272
    %v389 = vlaneseq
    %v390 = vshrl.u32 %v389, 7
    %v391 = vsub.s32 %v388, %v390
    %v392 = vrot.slane %v43, %v391
    %vm393 = vcmask 261312
    %v394 = vsel %vm393, %v392, %v387
    %v395 = vadd.s32 %v81, 4294967264
    %v396 = vlaneseq
    %v397 = vshrl.u32 %v396, 7
    %v398 = vsub.s32 %v395, %v397
    %v399 = vrot.slane %v46, %v398
    %vm400 = vcmask 326912
    %v401 = vsel %vm400, %v399, %v394
    %v402 = vadd.s32 %v81, 4294967256
    %v403 = vlaneseq
    %v404 = vshrl.u32 %v403, 7
    %v405 = vsub.s32 %v402, %v404
    %v406 = vrot.slane %v49, %v405
    %vm407 = vcmask 392512
    %v408 = vsel %vm407, %v406, %v401
    %v409 = vadd.s32 %v81, 4294967248
    %v410 = vlaneseq
    %v411 = vshrl.u32 %v410, 7
    %v412 = vsub.s32 %v409, %v411
    %v413 = vrot.slane %v52, %v412
    %vm414 = vcmask 458112
    %v415 = vsel %vm414, %v413, %v408
    %v416 = vadd.s32 %v81, 4294967240
    %v417 = vlaneseq
    %v418 = vshrl.u32 %v417, 7
    %v419 = vsub.s32 %v416, %v418
    %v420 = vrot.slane %v55, %v419
    %vm421 = vcmask 523712
    %v422 = vsel %vm421, %v420, %v415
    %v423 = vadd.s32 %v81, 4294967232
    %v424 = vlaneseq
    %v425 = vshrl.u32 %v424, 7
    %v426 = vsub.s32 %v423, %v425
    %v427 = vrot.slane %v58, %v426
    %vm428 = vcmask 589312
    %v429 = vsel %vm428, %v427, %v422
    %v430 = vadd.s32 %v81, 4294967224
    %v431 = vlaneseq
    %v432 = vshrl.u32 %v431, 7
    %v433 = vsub.s32 %v430, %v432
    %v434 = vrot.slane %v61, %v433
    %vm435 = vcmask 654912
    %v436 = vsel %vm435, %v434, %v429
    %v437 = vadd.s32 %v81, 4294967216
    %v438 = vlaneseq
    %v439 = vshrl.u32 %v438, 7
    %v440 = vsub.s32 %v437, %v439
    %v441 = vrot.slane %v64, %v440
    %vm442 = vcmask 720512
    %v443 = vsel %vm442, %v441, %v436
    %v444 = vadd.s32 %v81, 4294967208
    %v445 = vlaneseq
    %v446 = vshrl.u32 %v445, 7
    %v447 = vsub.s32 %v444, %v446
    %v448 = vrot.slane %v67, %v447
    %vm449 = vcmask 786112
    %v450 = vsel %vm449, %v448, %v443
    %v451 = vadd.s32 %v81, 4294967200
    %v452 = vlaneseq
    %v453 = vshrl.u32 %v452, 7
    %v454 = vsub.s32 %v451, %v453
    %v455 = vrot.slane %v70, %v454
    %vm456 = vcmask 851712
    %v457 = vsel %vm456, %v455, %v450
    %v458 = vadd.s32 %v81, 4294967192
    %v459 = vlaneseq
    %v460 = vshrl.u32 %v459, 7
    %v461 = vsub.s32 %v458, %v460
    %v462 = vrot.slane %v73, %v461
    %vm463 = vcmask 917312
    %v464 = vsel %vm463, %v462, %v457
    %v465 = vadd.s32 %v81, 4294967184
    %v466 = vlaneseq
    %v467 = vshrl.u32 %v466, 7
    %v468 = vsub.s32 %v465, %v467
    %v469 = vrot.slane %v76, %v468
    %vm470 = vcmask 982912
    %v471 = vsel %vm470, %v469, %v464
    %v472 = vadd.s32 %v81, 4294967176
    %v473 = vlaneseq
    %v474 = vshrl.u32 %v473, 7
    %v475 = vsub.s32 %v472, %v474
    %v476 = vrot.slane %v79, %v475
    %vm477 = vcmask 1048512
    %v478 = vsel %vm477, %v476, %v471
    %480 = vst [vmem:[#allocation2] sm:$0x1] %v478
    %v481 = vld [vmem:[%s1] sm:$0x1]
    %v482 = vlaneseq
    %v483 = vshrl.u32 %v482, 7
    %v484 = vsub.s32 0, %v483
    %v485 = vrot.slane %v481, %v484
    %487 = vbcast.lane.b32.xlu0 %v485, 256
    %v488 = vpop.permute.xlu0 %487
    %s490 = sor.u32 256, 8
    %491 = vbcast.lane.b32.xlu0 %v485, %s490
    %v492 = vpop.permute.xlu0 %491
    %s494 = sor.u32 256, 16
    %495 = vbcast.lane.b32.xlu0 %v485, %s494
    %v496 = vpop.permute.xlu0 %495
    %s498 = sor.u32 256, 24
    %499 = vbcast.lane.b32.xlu0 %v485, %s498
    %v500 = vpop.permute.xlu0 %499
    %s502 = sor.u32 256, 32
    %503 = vbcast.lane.b32.xlu0 %v485, %s502
    %v504 = vpop.permute.xlu0 %503
    %s506 = sor.u32 256, 40
    %507 = vbcast.lane.b32.xlu0 %v485, %s506
    %v508 = vpop.permute.xlu0 %507
    %s510 = sor.u32 256, 48
    %511 = vbcast.lane.b32.xlu0 %v485, %s510
    %v512 = vpop.permute.xlu0 %511
    %s514 = sor.u32 256, 56
    %515 = vbcast.lane.b32.xlu0 %v485, %s514
    %v516 = vpop.permute.xlu0 %515
    %s518 = sor.u32 256, 64
    %519 = vbcast.lane.b32.xlu0 %v485, %s518
    %v520 = vpop.permute.xlu0 %519
    %s522 = sor.u32 256, 72
    %523 = vbcast.lane.b32.xlu0 %v485, %s522
    %v524 = vpop.permute.xlu0 %523
    %s526 = sor.u32 256, 80
    %527 = vbcast.lane.b32.xlu0 %v485, %s526
    %v528 = vpop.permute.xlu0 %527
    %s530 = sor.u32 256, 88
    %531 = vbcast.lane.b32.xlu0 %v485, %s530
    %v532 = vpop.permute.xlu0 %531
    %s534 = sor.u32 256, 96
    %535 = vbcast.lane.b32.xlu0 %v485, %s534
    %v536 = vpop.permute.xlu0 %535
    %s538 = sor.u32 256, 104
    %539 = vbcast.lane.b32.xlu0 %v485, %s538
    %v540 = vpop.permute.xlu0 %539
    %s542 = sor.u32 256, 112
    %543 = vbcast.lane.b32.xlu0 %v485, %s542
    %v544 = vpop.permute.xlu0 %543
    %s546 = sor.u32 256, 120
    %547 = vbcast.lane.b32.xlu0 %v485, %s546
    %v548 = vpop.permute.xlu0 %547
    %vm549 = vcmp.eq.s32.totalorder %v128, %v488
    %vm550 = vcmp.eq.s32.totalorder %v143, %v492
    %vm551 = vcmp.eq.s32.totalorder %v158, %v496
    %vm552 = vcmp.eq.s32.totalorder %v173, %v500
    %vm553 = vcmp.eq.s32.totalorder %v188, %v504
    %vm554 = vcmp.eq.s32.totalorder %v203, %v508
    %vm555 = vcmp.eq.s32.totalorder %v218, %v512
    %vm556 = vcmp.eq.s32.totalorder %v233, %v516
    %vm557 = vcmp.eq.s32.totalorder %v248, %v520
    %vm558 = vcmp.eq.s32.totalorder %v263, %v524
    %vm559 = vcmp.eq.s32.totalorder %v278, %v528
    %vm560 = vcmp.eq.s32.totalorder %v293, %v532
    %vm561 = vcmp.eq.s32.totalorder %v308, %v536
    %vm562 = vcmp.eq.s32.totalorder %v323, %v540
    %vm563 = vcmp.eq.s32.totalorder %v338, %v544
    %vm564 = vcmp.eq.s32.totalorder %v353, %v548
    %v565 = vsel %vm549, 1, 0
    %v566 = vsel %vm550, 1, 0
    %v567 = vsel %vm551, 1, 0
    %v568 = vsel %vm552, 1, 0
    %v569 = vsel %vm553, 1, 0
    %v570 = vsel %vm554, 1, 0
    %v571 = vsel %vm555, 1, 0
    %v572 = vsel %vm556, 1, 0
    %v573 = vsel %vm557, 1, 0
    %v574 = vsel %vm558, 1, 0
    %v575 = vsel %vm559, 1, 0
    %v576 = vsel %vm560, 1, 0
    %v577 = vsel %vm561, 1, 0
    %v578 = vsel %vm562, 1, 0
    %v579 = vsel %vm563, 1, 0
    %v580 = vsel %vm564, 1, 0
    %v581 = vcvt.s32.f32 %v565
    %v582 = vcvt.s32.f32 %v566
    %v583 = vcvt.s32.f32 %v567
    %v584 = vcvt.s32.f32 %v568
    %v585 = vcvt.s32.f32 %v569
    %v586 = vcvt.s32.f32 %v570
    %v587 = vcvt.s32.f32 %v571
    %v588 = vcvt.s32.f32 %v572
    %v589 = vcvt.s32.f32 %v573
    %v590 = vcvt.s32.f32 %v574
    %v591 = vcvt.s32.f32 %v575
    %v592 = vcvt.s32.f32 %v576
    %v593 = vcvt.s32.f32 %v577
    %v594 = vcvt.s32.f32 %v578
    %v595 = vcvt.s32.f32 %v579
    %v596 = vcvt.s32.f32 %v580
    %613 = vset.pattern.permute.xlu0 0
    %614 = vperm.xlu0 %613, %v581
    %v615 = vpop.permute.xlu0 %614
    %616 = vset.pattern.permute.xlu0 0
    %617 = vperm.xlu0 %616, %v582
    %v618 = vpop.permute.xlu0 %617
    %619 = vset.pattern.permute.xlu0 0
    %620 = vperm.xlu0 %619, %v583
    %v621 = vpop.permute.xlu0 %620
    %622 = vset.pattern.permute.xlu0 0
    %623 = vperm.xlu0 %622, %v584
    %v624 = vpop.permute.xlu0 %623
    %625 = vset.pattern.permute.xlu0 0
    %626 = vperm.xlu0 %625, %v585
    %v627 = vpop.permute.xlu0 %626
    %628 = vset.pattern.permute.xlu0 0
    %629 = vperm.xlu0 %628, %v586
    %v630 = vpop.permute.xlu0 %629
    %631 = vset.pattern.permute.xlu0 0
    %632 = vperm.xlu0 %631, %v587
    %v633 = vpop.permute.xlu0 %632
    %634 = vset.pattern.permute.xlu0 0
    %635 = vperm.xlu0 %634, %v588
    %v636 = vpop.permute.xlu0 %635
    %637 = vset.pattern.permute.xlu0 0
    %638 = vperm.xlu0 %637, %v589
    %v639 = vpop.permute.xlu0 %638
    %640 = vset.pattern.permute.xlu0 0
    %641 = vperm.xlu0 %640, %v590
    %v642 = vpop.permute.xlu0 %641
    %643 = vset.pattern.permute.xlu0 0
    %644 = vperm.xlu0 %643, %v591
    %v645 = vpop.permute.xlu0 %644
    %646 = vset.pattern.permute.xlu0 0
    %647 = vperm.xlu0 %646, %v592
    %v648 = vpop.permute.xlu0 %647
    %649 = vset.pattern.permute.xlu0 0
    %650 = vperm.xlu0 %649, %v593
    %v651 = vpop.permute.xlu0 %650
    %652 = vset.pattern.permute.xlu0 0
    %653 = vperm.xlu0 %652, %v594
    %v654 = vpop.permute.xlu0 %653
    %655 = vset.pattern.permute.xlu0 0
    %656 = vperm.xlu0 %655, %v595
    %v657 = vpop.permute.xlu0 %656
    %658 = vset.pattern.permute.xlu0 0
    %659 = vperm.xlu0 %658, %v596
    %v660 = vpop.permute.xlu0 %659
    %v661 = vlaneseq
    %v662 = vshrl.u32 %v661, 7
    %v663 = vsub.s32 %v81, %v662
    %v664 = vrot.slane %v615, %v663
    %v665 = vlaneseq
    %v666 = vshrl.u32 %v665, 7
    %v667 = vsub.s32 %v374, %v666
    %v668 = vrot.slane %v618, %v667
    %v669 = vsel %vm379, %v668, %v664
    %v670 = vlaneseq
    %v671 = vshrl.u32 %v670, 7
    %v672 = vsub.s32 %v381, %v671
    %v673 = vrot.slane %v621, %v672
    %v674 = vsel %vm386, %v673, %v669
    %v675 = vlaneseq
    %v676 = vshrl.u32 %v675, 7
    %v677 = vsub.s32 %v388, %v676
    %v678 = vrot.slane %v624, %v677
    %v679 = vsel %vm393, %v678, %v674
    %v680 = vlaneseq
    %v681 = vshrl.u32 %v680, 7
    %v682 = vsub.s32 %v395, %v681
    %v683 = vrot.slane %v627, %v682
    %v684 = vsel %vm400, %v683, %v679
    %v685 = vlaneseq
    %v686 = vshrl.u32 %v685, 7
    %v687 = vsub.s32 %v402, %v686
    %v688 = vrot.slane %v630, %v687
    %v689 = vsel %vm407, %v688, %v684
    %v690 = vlaneseq
    %v691 = vshrl.u32 %v690, 7
    %v692 = vsub.s32 %v409, %v691
    %v693 = vrot.slane %v633, %v692
    %v694 = vsel %vm414, %v693, %v689
    %v695 = vlaneseq
    %v696 = vshrl.u32 %v695, 7
    %v697 = vsub.s32 %v416, %v696
    %v698 = vrot.slane %v636, %v697
    %v699 = vsel %vm421, %v698, %v694
    %v700 = vlaneseq
    %v701 = vshrl.u32 %v700, 7
    %v702 = vsub.s32 %v423, %v701
    %v703 = vrot.slane %v639, %v702
    %v704 = vsel %vm428, %v703, %v699
    %v705 = vlaneseq
    %v706 = vshrl.u32 %v705, 7
    %v707 = vsub.s32 %v430, %v706
    %v708 = vrot.slane %v642, %v707
    %v709 = vsel %vm435, %v708, %v704
    %v710 = vlaneseq
    %v711 = vshrl.u32 %v710, 7
    %v712 = vsub.s32 %v437, %v711
    %v713 = vrot.slane %v645, %v712
    %v714 = vsel %vm442, %v713, %v709
    %v715 = vlaneseq
    %v716 = vshrl.u32 %v715, 7
    %v717 = vsub.s32 %v444, %v716
    %v718 = vrot.slane %v648, %v717
    %v719 = vsel %vm449, %v718, %v714
    %v720 = vlaneseq
    %v721 = vshrl.u32 %v720, 7
    %v722 = vsub.s32 %v451, %v721
    %v723 = vrot.slane %v651, %v722
    %v724 = vsel %vm456, %v723, %v719
    %v725 = vlaneseq
    %v726 = vshrl.u32 %v725, 7
    %v727 = vsub.s32 %v458, %v726
    %v728 = vrot.slane %v654, %v727
    %v729 = vsel %vm463, %v728, %v724
    %v730 = vlaneseq
    %v731 = vshrl.u32 %v730, 7
    %v732 = vsub.s32 %v465, %v731
    %v733 = vrot.slane %v657, %v732
    %v734 = vsel %vm470, %v733, %v729
    %v735 = vlaneseq
    %v736 = vshrl.u32 %v735, 7
    %v737 = vsub.s32 %v472, %v736
    %v738 = vrot.slane %v660, %v737
    %v739 = vsel %vm477, %v738, %v734
    %741 = vst [vmem:[#allocation4] sm:$0x1] %v739
    // Predicated region
    $region10: #{tpu_custom_call.1} parent=1 // pred_check
      _
    $region11: #{tpu_custom_call.1} parent=1 // pred_check_branch
      %743 = sbr.rel (0) target = $region13
    $region12: #{tpu_custom_call.1} parent=1 // pred_region
      %s745 = ssub.s32 16, 16
      %746 = vsyncadd [#allocation3], %s745
      %s748 = sshll.u32 [#allocation2], 4
      %s749 = int_to_ptr.vmem [resolvable:$true] %s748
      %751 = dma.vmem_to_hbm [thread:$0]  %s749, 16, %s2, [#allocation3]
    $region13: #{tpu_custom_call.1} parent=1 // pred_fallthru
      _
    // Predicated region
    $region14: #{tpu_custom_call.1} parent=1 // pred_check
      _
    $region15: #{tpu_custom_call.1} parent=1 // pred_check_branch
      %753 = sbr.rel (0) target = $region17
    $region16: #{tpu_custom_call.1} parent=1 // pred_region
      %s755 = ssub.s32 16, 16
      %756 = vsyncadd [#allocation5], %s755
      %s758 = sshll.u32 [#allocation4], 4
      %s759 = int_to_ptr.vmem [resolvable:$true] %s758
      %761 = dma.vmem_to_hbm [thread:$0]  %s759, 16, %s3, [#allocation5]
    $region17: #{tpu_custom_call.1} parent=1 // pred_fallthru
      _
    // Predicated region
    $region18: #{tpu_custom_call.1} parent=1 // pred_check
      _
    $region19: #{tpu_custom_call.1} parent=1 // pred_check_branch
      %763 = sbr.rel (0) target = $region21
    $region20: #{tpu_custom_call.1} parent=1 // pred_region
      %764 = dma.done [#allocation3], 16
    $region21: #{tpu_custom_call.1} parent=1 // pred_fallthru
      _
    // Predicated region
    $region22: #{tpu_custom_call.1} parent=1 // pred_check
      _
    $region23: #{tpu_custom_call.1} parent=1 // pred_check_branch
      %766 = sbr.rel (0) target = $region25
    $region24: #{tpu_custom_call.1} parent=1 // pred_region
      %767 = dma.done [#allocation5], 16
    $region25: #{tpu_custom_call.1} parent=1 // pred_fallthru
      _
    %768 = vsyncpa [#allocation3], 1
    %769 = vsyncpa [#allocation5], 1

</llo_original>
